<compile_context>
chip_gen: v5e
topology: v5e:2x2
jax: 0.10.0
libtpu: 0.0.40
codegen_flags: <defaults>
</compile_context>

<pallas_src>
import jax
import jax.numpy as jnp
from jax.experimental import pallas as pl
from jax.experimental.pallas import tpu as pltpu

LANES = 128


def logreg_kernel(w_ref, b_ref, x_ref, o_ref):
    # w_ref, b_ref: (1, 1) scalars in SMEM.  x_ref / o_ref: (br, 128) f32 in VMEM.
    w = w_ref[0, 0]
    b = b_ref[0, 0]
    # Elementwise linear + sigmoid (VPU mul/add + EUP exp); fully hidden under DMA.
    o_ref[...] = jax.nn.sigmoid(x_ref[...] * w + b)


def _sigmoid_slab(x2d, w_s, b_s, block_rows):
    """Apply sigmoid(x*w + b) elementwise to a lane-dense [rows, 128] f32 slab."""
    rows, lanes = x2d.shape

    if rows < 16:
        br = rows                                   # single full-extent block
    else:
        # Guarantee >= 2 grid steps when rows allow it so the "parallel" axis
        # actually shards across both TensorCores on v7x (sublane-aligned).
        half = max(8, (rows // 2) // 8 * 8)
        br = min(block_rows, half)
    grid = (pl.cdiv(rows, br),)                     # ragged last block is masked by Pallas

    return pl.pallas_call(
        logreg_kernel,
        out_shape=jax.ShapeDtypeStruct((rows, lanes), jnp.float32),
        grid_spec=pl.GridSpec(
            grid=grid,
            in_specs=[
                pl.BlockSpec(memory_space=pltpu.MemorySpace.SMEM),   # w scalar
                pl.BlockSpec(memory_space=pltpu.MemorySpace.SMEM),   # b scalar
                pl.BlockSpec((br, lanes), lambda i: (i, 0)),         # x tile
            ],
            out_specs=pl.BlockSpec((br, lanes), lambda i: (i, 0)),
        ),
        compiler_params=pltpu.CompilerParams(
            dimension_semantics=("parallel",),
        ),
    )(w_s, b_s, x2d)


def logistic_regression(x, weight, bias, *, block_rows=4096):
    """x: [N, 1], weight: [1, 1] (out, in), bias: [1].  Returns sigmoid(x @ W.T + b) as [N, 1] f32."""
    n_batch, n_feat = int(x.shape[0]), int(x.shape[1])   # feature dim is 1
    n_elems = n_batch * n_feat
    if n_elems == 0:                                     # degenerate: empty batch
        return jnp.zeros((n_batch, n_feat), dtype=jnp.float32)

    # Tile rows must be a multiple of 8; default 4096*128*4B = 2 MiB per tile
    # (8 MiB double-buffered in+out: within v5e's 16 MiB default scoped VMEM).
    block_rows = max(8, (block_rows // 8) * 8)

    flat = x.reshape(-1).astype(jnp.float32)
    w_s = weight.reshape(1, 1).astype(jnp.float32)
    b_s = bias.reshape(1, 1).astype(jnp.float32)

    if n_elems % LANES == 0:
        # Fast path: zero-copy reshape into the lane-dense slab; no pad, no slice.
        out2d = _sigmoid_slab(flat.reshape(n_elems // LANES, LANES), w_s, b_s, block_rows)
        return out2d.reshape(n_batch, n_feat)

    # Ragged path: pad only up to the next (8, 128)-aligned slab (at most one
    # tile of dead elements), run the kernel, drop the padded tail.
    rows = pl.cdiv(n_elems, LANES)
    rows = ((rows + 7) // 8) * 8
    flat_p = jnp.pad(flat, (0, rows * LANES - n_elems))
    out2d = _sigmoid_slab(flat_p.reshape(rows, LANES), w_s, b_s, block_rows)
    return out2d.reshape(-1)[:n_elems].reshape(n_batch, n_feat)


if __name__ == "__main__":
    key = jax.random.PRNGKey(0)
    kx, kw, kb = jax.random.split(key, 3)

    # Linear(1, 1): weight (1, 1), bias (1,)
    weight = jax.random.normal(kw, (1, 1), dtype=jnp.float32) * 0.5
    bias = jax.random.normal(kb, (1,), dtype=jnp.float32) * 0.1

    # Exercise both paths: ragged small batch (pads a single tile), the
    # lane-dense zero-copy fast path, and a multi-step grid with a partial
    # (masked) last block.
    for i, batch in enumerate((8, 1024, 2432)):
        x = jax.random.normal(jax.random.fold_in(kx, i), (batch, 1), dtype=jnp.float32)
        y = jax.block_until_ready(logistic_regression(x, weight, bias))
        y_ref = jax.nn.sigmoid(x @ weight.T + bias)
        assert y.shape == (batch, 1)
        assert jnp.allclose(y, y_ref, atol=1e-6), (batch, y, y_ref)

    print("KERNEL_OK")
</pallas_src>

<mosaic_0001>
module attributes {stable_mosaic.version = 11 : i64} {
  func.func @logreg_kernel(%arg0: i32, %arg1: memref<1x1xf32, #tpu.memory_space<smem>>, %arg2: memref<1x1xf32, #tpu.memory_space<smem>>, %arg3: memref<8x128xf32, #tpu.memory_space<vmem>>, %arg4: memref<8x128xf32, #tpu.memory_space<vmem>>) attributes {dimension_semantics = [#tpu.dimension_semantics<parallel>], iteration_bounds = array<i64: 1>, scalar_prefetch = 0 : i64, scratch_operands = 0 : i64, tpu.core_type = #tpu.core_type<tc>, window_params = [{transform_indices = @transform_0, window_bounds = array<i64: 1, 1>}, {transform_indices = @transform_1, window_bounds = array<i64: 1, 1>}, {transform_indices = @transform_2, window_bounds = array<i64: 8, 128>}, {transform_indices = @transform_3, window_bounds = array<i64: 8, 128>}]} {
    %c0 = arith.constant 0 : index
    %c0_0 = arith.constant 0 : index
    %0 = memref.load %arg1[%c0, %c0_0] : memref<1x1xf32, #tpu.memory_space<smem>>
    %c0_1 = arith.constant 0 : index
    %c0_2 = arith.constant 0 : index
    %1 = memref.load %arg2[%c0_1, %c0_2] : memref<1x1xf32, #tpu.memory_space<smem>>
    %c0_3 = arith.constant 0 : index
    %c0_4 = arith.constant 0 : index
    %2 = vector.load %arg3[%c0_3, %c0_4] : memref<8x128xf32, #tpu.memory_space<vmem>>, vector<8x128xf32>
    %3 = vector.broadcast %0 : f32 to vector<8x128xf32>
    %4 = arith.mulf %2, %3 : vector<8x128xf32>
    %5 = vector.broadcast %1 : f32 to vector<8x128xf32>
    %6 = arith.addf %4, %5 : vector<8x128xf32>
    %7 = arith.negf %6 : vector<8x128xf32>
    %8 = math.exp %7 : vector<8x128xf32>
    %cst = arith.constant 1.000000e+00 : f32
    %9 = vector.broadcast %cst : f32 to vector<8x128xf32>
    %10 = arith.addf %9, %8 : vector<8x128xf32>
    %11 = arith.divf %9, %10 : vector<8x128xf32>
    %c0_5 = arith.constant 0 : index
    %c0_6 = arith.constant 0 : index
    %12 = vector.load %arg4[%c0_5, %c0_6] : memref<8x128xf32, #tpu.memory_space<vmem>>, vector<8x128xf32>
    tpu.vector_store %arg4[%c0_5, %c0_6], %11 {strides = array<i32>} : memref<8x128xf32, #tpu.memory_space<vmem>>, vector<8x128xf32>,
    return
  }
  func.func @transform_0(%arg0: i32) -> (i32, i32) {
    %c0_i32 = arith.constant 0 : i32
    %c0_i32_0 = arith.constant 0 : i32
    %c0_i32_1 = arith.constant 0 : i32
    return %c0_i32, %c0_i32_0 : i32, i32
  }
  func.func @transform_1(%arg0: i32) -> (i32, i32) {
    %c0_i32 = arith.constant 0 : i32
    %c0_i32_0 = arith.constant 0 : i32
    %c0_i32_1 = arith.constant 0 : i32
    return %c0_i32, %c0_i32_0 : i32, i32
  }
  func.func @transform_2(%arg0: i32) -> (i32, i32) {
    %c0_i32 = arith.constant 0 : i32
    %c0_i32_0 = arith.constant 0 : i32
    return %arg0, %c0_i32 : i32, i32
  }
  func.func @transform_3(%arg0: i32) -> (i32, i32) {
    %c0_i32 = arith.constant 0 : i32
    %c0_i32_0 = arith.constant 0 : i32
    return %arg0, %c0_i32 : i32, i32
  }
}

</mosaic_0001>

<llo_original>
// kernel: tpu_custom_call.1
$region0: #{tpu_custom_call.1}
  #allocation0 [shape = 'u32[]', space=smem, size = 0x4, offset = 0x4, fixed_abs, tag = 'smem constant byte address 0x4 - core index']
  #allocation1 [shape = 'u32[72,128]{1,0:T(1,128)}', space=vmem, size = 0x9000, scoped, tag = 'internal scratch']
  #allocation2 [shape = 'f32[1,1]{1,0:T(1,128)S(6)}', space=smem, size = 0x200, scoped, tag = 'scoped memory for tpu_custom_call.1']
  #allocation3 [shape = 'f32[1,1]{1,0:T(1,128)S(6)}', space=smem, size = 0x200, scoped, tag = 'scoped memory for tpu_custom_call.1']
  %s0 = inlined_call_operand.<no memory space> [shape: f32[1,1], index: 0, kind: input, shape index: {}]
  %s1 = inlined_call_operand.<no memory space> [shape: f32[1,1], index: 1, kind: input, shape index: {}]
  %s2 = inlined_call_operand.hbm [shape: f32[8,128], index: 2, kind: input, shape index: {}]
  %s3 = inlined_call_operand.hbm [shape: f32[8,128], index: 3, kind: output, shape index: {}]
  %s4 = sld [smem:[#allocation0]]
  $region26: #{tpu_custom_call.1} parent=0
    _
  %s6 = ssub.s32 1, %s4
  %s7 = scalar_select 0, %s6, %s4
  %8 = sst [smem:[#allocation2]] %s0
  %9 = sst [smem:[#allocation3]] %s1
  $region1: #{tpu_custom_call.1} parent=0
    #allocation4 [shape = 'u8[4096]{0}', space=vmem, size = 0x1000, scoped, tag = 'input window, operand 2, single buffered']
    #allocation5 [shape = 's32[1]{0}', space=sflag, size = 0x4, scoped, tag = 'scoped memory for tpu_custom_call.1']
    #allocation6 [shape = 's32[1]{0}', space=sflag, size = 0x4, scoped, tag = 'scoped memory for tpu_custom_call.1']
    #allocation7 [shape = 'u8[4096]{0}', space=vmem, size = 0x1000, scoped, tag = 'output window, operand 0, single buffered']
    %10 = vsyncpa [#allocation5], 0
    %11 = vsyncpa [#allocation6], 0
    // Predicated region
    $region2: #{tpu_custom_call.1} parent=1 // pred_check
      _
    $region3: #{tpu_custom_call.1} parent=1 // pred_check_branch
      %13 = sbr.rel (0) target = $region5
    $region4: #{tpu_custom_call.1} parent=1 // pred_region
      _
    $region5: #{tpu_custom_call.1} parent=1 // pred_fallthru
      _
    // Predicated region
    $region6: #{tpu_custom_call.1} parent=1 // pred_check
      _
    $region7: #{tpu_custom_call.1} parent=1 // pred_check_branch
      %15 = sbr.rel (0) target = $region9
    $region8: #{tpu_custom_call.1} parent=1 // pred_region
      _
    $region9: #{tpu_custom_call.1} parent=1 // pred_fallthru
      _
    // Predicated region
    $region10: #{tpu_custom_call.1} parent=1 // pred_check
      _
    $region11: #{tpu_custom_call.1} parent=1 // pred_check_branch
      %17 = sbr.rel (0) target = $region13
    $region12: #{tpu_custom_call.1} parent=1 // pred_region
      %19 = vsyncadd [#allocation5], 0
      %s21 = sshll.u32 %s2, 4
      %s22 = int_to_ptr.hbm [resolvable:$true] %s21
      %s23 = sshll.u32 [#allocation4], 4
      %s24 = int_to_ptr.vmem [resolvable:$true] %s23
      %26 = dma.hbm_to_vmem [thread:$0]  %s22, 128, %s24, [#allocation5]
    $region13: #{tpu_custom_call.1} parent=1 // pred_fallthru
      _
    // Predicated region
    $region14: #{tpu_custom_call.1} parent=1 // pred_check
      _
    $region15: #{tpu_custom_call.1} parent=1 // pred_check_branch
      %28 = sbr.rel (0) target = $region17
    $region16: #{tpu_custom_call.1} parent=1 // pred_region
      %30 = dma.done [#allocation5], 128
    $region17: #{tpu_custom_call.1} parent=1 // pred_fallthru
      _
    %s31 = sld [smem:[#allocation2]]
    %s32 = sld [smem:[#allocation3]]
    %v33 = vld [vmem:[#allocation4] sm:$0xff]
    %v34 = vstv %s31
    %v35 = vmul.f32 %v33, %v34
    %v36 = vstv %s32
    %v37 = vadd.f32 %v35, %v36
    %v38 = vxor.u32 %v37, 2147483648
    %v39 = vmul.f32 %v38, 1.442695
    %v40 = vpow.pop %v39
    %v41 = vadd.f32 %v40, 1.0
    %v42 = vrcp.pop %v41
    %v43 = vmul.f32 %v41, %v42
    %v44 = vsub.f32 1.0, %v43
    %v45 = vmul.f32 %v42, %v44
    %v46 = vadd.f32 %v42, %v45
    %vm47 = vweird.f32 %v41
    %vm48 = vweird.f32 %v42
    %vm49 = vmor %vm47, %vm48
    %v50 = vsel %vm49, %v42, %v46
    %v51 = vand.u32 2147483647, %v41
    %vm52 = vcmp.eq.f32.partialorder %v51, 8.507059e+37
    %v53 = vand.u32 %v41, 2147483648
    %v54 = vor.u32 1.1754944e-38, %v53
    %v55 = vsel %vm52, %v54, %v50
    %v56 = vmul.f32 1.0, %v55
    %57 = vst [vmem:[#allocation7] sm:$0xff] %v56
    // Predicated region
    $region18: #{tpu_custom_call.1} parent=1 // pred_check
      _
    $region19: #{tpu_custom_call.1} parent=1 // pred_check_branch
      %59 = sbr.rel (0) target = $region21
    $region20: #{tpu_custom_call.1} parent=1 // pred_region
      %61 = vsyncadd [#allocation6], 0
      %s63 = sshll.u32 [#allocation7], 4
      %s64 = int_to_ptr.vmem [resolvable:$true] %s63
      %s65 = sshll.u32 %s3, 4
      %s66 = int_to_ptr.hbm [resolvable:$true] %s65
      %68 = dma.vmem_to_hbm [thread:$0]  %s64, 128, %s66, [#allocation6]
    $region21: #{tpu_custom_call.1} parent=1 // pred_fallthru
      _
    // Predicated region
    $region22: #{tpu_custom_call.1} parent=1 // pred_check
      _
    $region23: #{tpu_custom_call.1} parent=1 // pred_check_branch
      %70 = sbr.rel (0) target = $region25
    $region24: #{tpu_custom_call.1} parent=1 // pred_region
      %72 = dma.done [#allocation6], 128
    $region25: #{tpu_custom_call.1} parent=1 // pred_fallthru
      _
    %73 = vsyncpa [#allocation5], 1
    %74 = vsyncpa [#allocation6], 1

</llo_original>
